<compile_context>
chip_gen: v7x
topology: tpu7x:2x2x1
jax: 0.10.0
libtpu: 0.0.40
codegen_flags: <defaults>
</compile_context>

<pallas_src>
import jax
import jax.numpy as jnp
from jax import lax
from jax.experimental import pallas as pl


# ----------------------------------------------------------------------------
# Fused forward kernel: for each layer
#   in-kernel degree norms -> normalized aggregate (MXU) -> linear (MXU)
#   -> bias -> ReLU,
# then a global Frobenius normalize of the final h. Intermediate h stays
# on-chip for the whole forward.
# ----------------------------------------------------------------------------
def _make_gcn_kernel(n_layers):
    def kernel(*refs):
        h_ref, o_ref = refs[0], refs[-1]
        layer_refs = refs[1:-1]

        h = h_ref[...]                                           # (S0, Fin)
        for l in range(n_layers):
            a_ref, w_ref, b_ref = layer_refs[3 * l : 3 * l + 3]
            a = a_ref[...]                                       # (D, S)

            # DGL norm='both', allow_zero_in_degree=True:
            #   scale src by clamp(out_deg,1)^-1/2, dst by clamp(in_deg,1)^-1/2.
            # Fold both norms into A so they broadcast without transposes.
            norm_src = lax.rsqrt(
                jnp.maximum(jnp.sum(a, axis=0, keepdims=True), 1.0))  # (1, S)
            norm_dst = lax.rsqrt(
                jnp.maximum(jnp.sum(a, axis=1, keepdims=True), 1.0))  # (D, 1)
            a = a * norm_src * norm_dst

            agg = jnp.dot(a, h, preferred_element_type=jnp.float32)        # (D, Fin)
            out = jnp.dot(agg, w_ref[...], preferred_element_type=jnp.float32)  # (D, Fout)
            h = jnp.maximum(out + b_ref[...], 0.0)               # bias + ReLU
            # dropout between layers: identity in eval mode

        # final global Frobenius normalization: h / ||h||_F
        o_ref[...] = h * lax.rsqrt(jnp.sum(h * h))

    return kernel


# ----------------------------------------------------------------------------
# GCN forward (single pallas_call for the whole network)
# ----------------------------------------------------------------------------
def gcn_forward(params, input_nodes, blocks):
    # embedding lookup (gather) is XLA glue outside the kernel
    h = jnp.take(params["embedding"], input_nodes, axis=0).astype(jnp.float32)

    weights = params["weights"]
    biases = params["biases"]
    n_layers = len(weights)

    flat_inputs = []
    for a, w, b in zip(blocks, weights, biases):
        flat_inputs += [
            a.astype(jnp.float32),
            w.astype(jnp.float32),
            b.reshape(1, -1).astype(jnp.float32),
        ]

    d_last = blocks[-1].shape[0]
    f_last = weights[-1].shape[1]

    # No grid: every (tiny) operand is resident in VMEM for the whole call;
    # the intermediate h lives entirely on-chip.
    return pl.pallas_call(
        _make_gcn_kernel(n_layers),
        out_shape=jax.ShapeDtypeStruct((d_last, f_last), jnp.float32),
    )(h, *flat_inputs)


if __name__ == "__main__":
    # model hyper-parameters
    num_nodes = 64
    in_feats = 16
    n_hidden = 32
    n_layers = 2

    # block (MFG) sizes: layer 0 maps 32 src -> 16 dst, layer 1 maps 16 -> 8
    src0, dst0 = 32, 16
    src1, dst1 = 16, 8

    key = jax.random.PRNGKey(0)
    k_emb, k_w0, k_b0, k_w1, k_b1, k_a0, k_a1, k_in = jax.random.split(key, 8)

    params = {
        "embedding": jax.random.normal(k_emb, (num_nodes, in_feats), jnp.float32),
        "weights": [
            jax.random.normal(k_w0, (in_feats, n_hidden), jnp.float32)
            * (1.0 / jnp.sqrt(in_feats)),
            jax.random.normal(k_w1, (n_hidden, n_hidden), jnp.float32)
            * (1.0 / jnp.sqrt(n_hidden)),
        ],
        "biases": [
            jax.random.normal(k_b0, (n_hidden,), jnp.float32) * 0.01,
            jax.random.normal(k_b1, (n_hidden,), jnp.float32) * 0.01,
        ],
    }

    # dense adjacency matrices for the two blocks [num_dst, num_src]
    adj0 = (jax.random.uniform(k_a0, (dst0, src0)) < 0.3).astype(jnp.float32)
    adj1 = (jax.random.uniform(k_a1, (dst1, src1)) < 0.3).astype(jnp.float32)
    blocks = [adj0, adj1]

    # input node ids for the first block's source nodes
    input_nodes = jax.random.randint(k_in, (src0,), 0, num_nodes)

    # jit the wrapper so the embedding gather / bias reshapes fuse into one
    # XLA program around the single fused Pallas call.
    fwd = jax.jit(gcn_forward)
    out = fwd(params, input_nodes, blocks)
    out = jax.block_until_ready(out)

    assert out.shape == (dst1, n_hidden)
    assert jnp.isfinite(out).all()
    print("KERNEL_OK")
</pallas_src>

<mosaic_0001>
module attributes {stable_mosaic.version = 11 : i64} {
  func.func @kernel(%arg0: memref<32x16xf32, #tpu.memory_space<vmem>>, %arg1: memref<16x32xf32, #tpu.memory_space<vmem>>, %arg2: memref<16x32xf32, #tpu.memory_space<vmem>>, %arg3: memref<1x32xf32, #tpu.memory_space<vmem>>, %arg4: memref<8x16xf32, #tpu.memory_space<vmem>>, %arg5: memref<32x32xf32, #tpu.memory_space<vmem>>, %arg6: memref<1x32xf32, #tpu.memory_space<vmem>>, %arg7: memref<8x32xf32, #tpu.memory_space<vmem>>) attributes {dimension_semantics = [], scalar_prefetch = 0 : i64, scratch_operands = 0 : i64, tpu.core_type = #tpu.core_type<tc>} {
    %c0 = arith.constant 0 : index
    %c0_0 = arith.constant 0 : index
    %0 = vector.load %arg0[%c0, %c0_0] : memref<32x16xf32, #tpu.memory_space<vmem>>, vector<32x16xf32>
    %c0_1 = arith.constant 0 : index
    %c0_2 = arith.constant 0 : index
    %1 = vector.load %arg1[%c0_1, %c0_2] : memref<16x32xf32, #tpu.memory_space<vmem>>, vector<16x32xf32>
    %cst = arith.constant dense<0.000000e+00> : vector<32xf32>
    %2 = vector.multi_reduction <add>, %1, %cst [0] : vector<16x32xf32> to vector<32xf32>
    %3 = vector.shape_cast %2 : vector<32xf32> to vector<1x32xf32>
    %cst_3 = arith.constant 1.000000e+00 : f32
    %4 = vector.broadcast %cst_3 : f32 to vector<1x32xf32>
    %5 = arith.maximumf %3, %4 : vector<1x32xf32>
    %6 = math.rsqrt %5 : vector<1x32xf32>
    %cst_4 = arith.constant dense<0.000000e+00> : vector<16xf32>
    %7 = vector.multi_reduction <add>, %1, %cst_4 [1] : vector<16x32xf32> to vector<16xf32>
    %8 = vector.shape_cast %7 : vector<16xf32> to vector<16x1xf32>
    %cst_5 = arith.constant 1.000000e+00 : f32
    %9 = vector.broadcast %cst_5 : f32 to vector<16x1xf32>
    %10 = arith.maximumf %8, %9 : vector<16x1xf32>
    %11 = math.rsqrt %10 : vector<16x1xf32>
    %12 = vector.broadcast %6 : vector<1x32xf32> to vector<16x32xf32>
    %13 = arith.mulf %1, %12 : vector<16x32xf32>
    %14 = vector.broadcast %11 : vector<16x1xf32> to vector<16x32xf32>
    %15 = arith.mulf %13, %14 : vector<16x32xf32>
    %cst_6 = arith.constant dense<0.000000e+00> : vector<16x16xf32>
    %16 = tpu.matmul %15, %0, %cst_6 {dimension_numbers = #tpu.dot_dimension_numbers<[1], [0], [0], [1], [0, 0, 1, 1], [], []>} : vector<16x32xf32>, vector<32x16xf32>, vector<16x16xf32> -> vector<16x16xf32>
    %c0_7 = arith.constant 0 : index
    %c0_8 = arith.constant 0 : index
    %17 = vector.load %arg2[%c0_7, %c0_8] : memref<16x32xf32, #tpu.memory_space<vmem>>, vector<16x32xf32>
    %cst_9 = arith.constant dense<0.000000e+00> : vector<16x32xf32>
    %18 = tpu.matmul %16, %17, %cst_9 {dimension_numbers = #tpu.dot_dimension_numbers<[1], [0], [0], [1], [0, 0, 1, 1], [], []>} : vector<16x16xf32>, vector<16x32xf32>, vector<16x32xf32> -> vector<16x32xf32>
    %c0_10 = arith.constant 0 : index
    %c0_11 = arith.constant 0 : index
    %19 = vector.load %arg3[%c0_10, %c0_11] : memref<1x32xf32, #tpu.memory_space<vmem>>, vector<1x32xf32>
    %20 = vector.broadcast %19 : vector<1x32xf32> to vector<16x32xf32>
    %21 = arith.addf %18, %20 : vector<16x32xf32>
    %cst_12 = arith.constant 0.000000e+00 : f32
    %22 = vector.broadcast %cst_12 : f32 to vector<16x32xf32>
    %23 = arith.maximumf %21, %22 : vector<16x32xf32>
    %c0_13 = arith.constant 0 : index
    %c0_14 = arith.constant 0 : index
    %24 = vector.load %arg4[%c0_13, %c0_14] : memref<8x16xf32, #tpu.memory_space<vmem>>, vector<8x16xf32>
    %cst_15 = arith.constant dense<0.000000e+00> : vector<16xf32>
    %25 = vector.multi_reduction <add>, %24, %cst_15 [0] : vector<8x16xf32> to vector<16xf32>
    %26 = vector.shape_cast %25 : vector<16xf32> to vector<1x16xf32>
    %cst_16 = arith.constant 1.000000e+00 : f32
    %27 = vector.broadcast %cst_16 : f32 to vector<1x16xf32>
    %28 = arith.maximumf %26, %27 : vector<1x16xf32>
    %29 = math.rsqrt %28 : vector<1x16xf32>
    %cst_17 = arith.constant dense<0.000000e+00> : vector<8xf32>
    %30 = vector.multi_reduction <add>, %24, %cst_17 [1] : vector<8x16xf32> to vector<8xf32>
    %31 = vector.shape_cast %30 : vector<8xf32> to vector<8x1xf32>
    %cst_18 = arith.constant 1.000000e+00 : f32
    %32 = vector.broadcast %cst_18 : f32 to vector<8x1xf32>
    %33 = arith.maximumf %31, %32 : vector<8x1xf32>
    %34 = math.rsqrt %33 : vector<8x1xf32>
    %35 = vector.broadcast %29 : vector<1x16xf32> to vector<8x16xf32>
    %36 = arith.mulf %24, %35 : vector<8x16xf32>
    %37 = vector.broadcast %34 : vector<8x1xf32> to vector<8x16xf32>
    %38 = arith.mulf %36, %37 : vector<8x16xf32>
    %cst_19 = arith.constant dense<0.000000e+00> : vector<8x32xf32>
    %39 = tpu.matmul %38, %23, %cst_19 {dimension_numbers = #tpu.dot_dimension_numbers<[1], [0], [0], [1], [0, 0, 1, 1], [], []>} : vector<8x16xf32>, vector<16x32xf32>, vector<8x32xf32> -> vector<8x32xf32>
    %c0_20 = arith.constant 0 : index
    %c0_21 = arith.constant 0 : index
    %40 = vector.load %arg5[%c0_20, %c0_21] : memref<32x32xf32, #tpu.memory_space<vmem>>, vector<32x32xf32>
    %cst_22 = arith.constant dense<0.000000e+00> : vector<8x32xf32>
    %41 = tpu.matmul %39, %40, %cst_22 {dimension_numbers = #tpu.dot_dimension_numbers<[1], [0], [0], [1], [0, 0, 1, 1], [], []>} : vector<8x32xf32>, vector<32x32xf32>, vector<8x32xf32> -> vector<8x32xf32>
    %c0_23 = arith.constant 0 : index
    %c0_24 = arith.constant 0 : index
    %42 = vector.load %arg6[%c0_23, %c0_24] : memref<1x32xf32, #tpu.memory_space<vmem>>, vector<1x32xf32>
    %43 = vector.broadcast %42 : vector<1x32xf32> to vector<8x32xf32>
    %44 = arith.addf %41, %43 : vector<8x32xf32>
    %cst_25 = arith.constant 0.000000e+00 : f32
    %45 = vector.broadcast %cst_25 : f32 to vector<8x32xf32>
    %46 = arith.maximumf %44, %45 : vector<8x32xf32>
    %47 = arith.mulf %46, %46 : vector<8x32xf32>
    %48 = vector.shape_cast %47 : vector<8x32xf32> to vector<1x8x32xf32>
    %cst_26 = arith.constant dense<0.000000e+00> : vector<1xf32>
    %49 = vector.multi_reduction <add>, %48, %cst_26 [1, 2] : vector<1x8x32xf32> to vector<1xf32>
    %50 = vector.shape_cast %49 : vector<1xf32> to vector<1x1x1xf32>
    %51 = vector.extract %50[0, 0, 0] : f32 from vector<1x1x1xf32>
    %52 = math.rsqrt %51 : f32
    %53 = vector.broadcast %52 : f32 to vector<8x32xf32>
    %54 = arith.mulf %46, %53 : vector<8x32xf32>
    %c0_27 = arith.constant 0 : index
    %c0_28 = arith.constant 0 : index
    %55 = vector.load %arg7[%c0_27, %c0_28] : memref<8x32xf32, #tpu.memory_space<vmem>>, vector<8x32xf32>
    tpu.vector_store %arg7[%c0_27, %c0_28], %54 {strides = array<i32>} : memref<8x32xf32, #tpu.memory_space<vmem>>, vector<8x32xf32>,
    return
  }
}

</mosaic_0001>

<llo_original>
// kernel: gcn_forward.1
$region0: #{gcn_forward.1}
  #allocation0 [shape = 'u32[]', space=smem, size = 0x4, offset = 0x4, fixed_abs, tag = 'smem constant byte address 0x4 - core index']
  #allocation1 [shape = 'u32[144,128]{1,0:T(1,128)}', space=vmem, size = 0x12000, scoped, tag = 'internal scratch']
  %s0 = inlined_call_operand.vmem [shape: f32[32,16], index: 0, kind: input, shape index: {}]
  %s1 = inlined_call_operand.vmem [shape: f32[16,32], index: 1, kind: input, shape index: {}]
  %s2 = inlined_call_operand.vmem [shape: f32[16,32], index: 2, kind: input, shape index: {}]
  %s3 = inlined_call_operand.vmem [shape: f32[1,32], index: 3, kind: input, shape index: {}]
  %s4 = inlined_call_operand.vmem [shape: f32[8,16], index: 4, kind: input, shape index: {}]
  %s5 = inlined_call_operand.vmem [shape: f32[32,32], index: 5, kind: input, shape index: {}]
  %s6 = inlined_call_operand.vmem [shape: f32[1,32], index: 6, kind: input, shape index: {}]
  %s7 = inlined_call_operand.hbm [shape: f32[8,32], index: 7, kind: output, shape index: {}]
  %s8 = sld [smem:[#allocation0]]
  $region38: #{gcn_forward.1} parent=0
    _
  %s10 = ssub.s32 1, %s8
  %s11 = scalar_select 0, %s10, %s8
  $region1: #{gcn_forward.1} parent=0
    #allocation2 [shape = 'u8[4096]{0}', space=vmem, size = 0x1000, scoped, tag = 'output window, operand 0, single buffered']
    #allocation3 [shape = 's32[1]{0}', space=sflag, size = 0x4, scoped, tag = 'scoped memory for gcn_forward.1']
    %12 = vsyncpa [#allocation3], 0
    // Predicated region
    $region2: #{gcn_forward.1} parent=1 // pred_check
      _
    $region3: #{gcn_forward.1} parent=1 // pred_check_branch
      %14 = sbr.rel (0) target = $region5
    $region4: #{gcn_forward.1} parent=1 // pred_region
      _
    $region5: #{gcn_forward.1} parent=1 // pred_fallthru
      _
    // Predicated region
    $region6: #{gcn_forward.1} parent=1 // pred_check
      _
    $region7: #{gcn_forward.1} parent=1 // pred_check_branch
      %16 = sbr.rel (0) target = $region9
    $region8: #{gcn_forward.1} parent=1 // pred_region
      _
    $region9: #{gcn_forward.1} parent=1 // pred_fallthru
      _
    // Predicated region
    $region10: #{gcn_forward.1} parent=1 // pred_check
      _
    $region11: #{gcn_forward.1} parent=1 // pred_check_branch
      %18 = sbr.rel (0) target = $region13
    $region12: #{gcn_forward.1} parent=1 // pred_region
      _
    $region13: #{gcn_forward.1} parent=1 // pred_fallthru
      _
    // Predicated region
    $region14: #{gcn_forward.1} parent=1 // pred_check
      _
    $region15: #{gcn_forward.1} parent=1 // pred_check_branch
      %20 = sbr.rel (0) target = $region17
    $region16: #{gcn_forward.1} parent=1 // pred_region
      _
    $region17: #{gcn_forward.1} parent=1 // pred_fallthru
      _
    // Predicated region
    $region18: #{gcn_forward.1} parent=1 // pred_check
      _
    $region19: #{gcn_forward.1} parent=1 // pred_check_branch
      %22 = sbr.rel (0) target = $region21
    $region20: #{gcn_forward.1} parent=1 // pred_region
      _
    $region21: #{gcn_forward.1} parent=1 // pred_fallthru
      _
    // Predicated region
    $region22: #{gcn_forward.1} parent=1 // pred_check
      _
    $region23: #{gcn_forward.1} parent=1 // pred_check_branch
      %24 = sbr.rel (0) target = $region25
    $region24: #{gcn_forward.1} parent=1 // pred_region
      _
    $region25: #{gcn_forward.1} parent=1 // pred_fallthru
      _
    // Predicated region
    $region26: #{gcn_forward.1} parent=1 // pred_check
      _
    $region27: #{gcn_forward.1} parent=1 // pred_check_branch
      %26 = sbr.rel (0) target = $region29
    $region28: #{gcn_forward.1} parent=1 // pred_region
      _
    $region29: #{gcn_forward.1} parent=1 // pred_fallthru
      _
    %v27 = vld [vmem:[%s0] sm:$0xff]
    %v28 = vld [vmem:[%s0 + $0x8] sm:$0xff]
    %v29 = vld [vmem:[%s0 + $0x10] sm:$0xff]
    %v30 = vld [vmem:[%s0 + $0x18] sm:$0xff]
    %v31 = vld [vmem:[%s1] sm:$0xff]
    %v32 = vld [vmem:[%s1 + $0x8] sm:$0xff]
    %vm33 = vcmask 261120
    %v34 = vsel %vm33, %v31, 0.0
    %v35 = vsel %vm33, %v32, 0.0
    %v36 = vadd.f32 %v34, %v35
    %v37 = vrot.slane %v36, 4
    %v38 = vadd.f32 %v36, %v37
    %v39 = vrot.slane %v38, 2
    %v40 = vadd.f32 %v38, %v39
    %v41 = vrot.slane %v40, 1
    %v42 = vadd.f32 %v40, %v41
    %v43 = vmax.f32 %v42, 1.0
    %v44 = vrsqrt.pop %v43
    %45 = vadd.xlane.f32.xlu0 %v34
    %v46 = vpop.xlane.xlu0 %45
    %47 = vadd.xlane.f32.xlu0 %v35
    %v48 = vpop.xlane.xlu0 %47
    %v49 = vmax.f32 %v46, 1.0
    %v50 = vmax.f32 %v48, 1.0
    %v51 = vrsqrt.pop %v49
    %v52 = vrsqrt.pop %v50
    %v53 = vmul.f32 %v31, %v44
    %v54 = vmul.f32 %v32, %v44
    %v55 = vmul.f32 %v53, %v51
    %v56 = vmul.f32 %v54, %v52
    %v58 = vsel %vm33, %v55, 0
    %v61 = vsel %vm33, %v56, 0
    %63 = vmatprep.subr.mxu0 0.0
    %64 = vmatpush1.msra.mxu0 %v27
    %65 = vmatprep.subr.mxu0 0.0
    %66 = vmatpush1.msra.mxu0 %v28
    %67 = vmatprep.subr.mxu0 0.0
    %68 = vmatpush1.msra.mxu0 %v29
    %69 = vmatprep.subr.mxu0 0.0
    %70 = vmatpush1.msra.mxu0 %v30
    %71 = vmatprep.subr.mxu0 0.0
    %72 = vmatpush1.msra.mxu0 0.0
    %73 = vmatprep.subr.mxu0 0.0
    %74 = vmatpush1.msra.mxu0 0.0
    %75 = vmatprep.subr.mxu0 0.0
    %76 = vmatpush1.msra.mxu0 0.0
    %77 = vmatprep.subr.mxu0 0.0
    %78 = vmatpush1.msra.mxu0 0.0
    %79 = vmatprep.subr.mxu0 0.0
    %80 = vmatpush1.msra.mxu0 0.0
    %81 = vmatprep.subr.mxu0 0.0
    %82 = vmatpush1.msra.mxu0 0.0
    %83 = vmatprep.subr.mxu0 0.0
    %84 = vmatpush1.msra.mxu0 0.0
    %85 = vmatprep.subr.mxu0 0.0
    %86 = vmatpush1.msra.mxu0 0.0
    %87 = vmatprep.subr.mxu0 0.0
    %88 = vmatpush1.msra.mxu0 0.0
    %89 = vmatprep.subr.mxu0 0.0
    %90 = vmatpush1.msra.mxu0 0.0
    %91 = vmatprep.subr.mxu0 0.0
    %92 = vmatpush1.msra.mxu0 0.0
    %93 = vmatprep.subr.mxu0 0.0
    %94 = vmatpush1.msra.mxu0 0.0
    %95 = vmatprep.subr.mxu0 0.0
    %96 = vmatpush1.msra.mxu0 0.0
    %97 = vmatprep.subr.mxu0 0.0
    %98 = vmatpush1.msra.mxu0 0.0
    %99 = vmatprep.subr.mxu0 0.0
    %100 = vmatpush1.msra.mxu0 0.0
    %101 = vmatprep.subr.mxu0 0.0
    %102 = vmatpush1.msra.mxu0 0.0
    %103 = vmatprep.subr.mxu0 0.0
    %104 = vmatpush1.msra.mxu0 0.0
    %105 = vmatprep.subr.mxu0 0.0
    %106 = vmatpush1.msra.mxu0 0.0
    %107 = vmatprep.subr.mxu0 0.0
    %108 = vmatpush1.msra.mxu0 0.0
    %109 = vmatprep.subr.mxu0 0.0
    %110 = vmatpush1.msra.mxu0 0.0
    %111 = vmatprep.subr.mxu0 0.0
    %112 = vmatpush1.msra.mxu0 0.0
    %113 = vmatprep.subr.mxu0 0.0
    %114 = vmatpush1.msra.mxu0 0.0
    %115 = vmatprep.subr.mxu0 0.0
    %116 = vmatpush1.msra.mxu0 0.0
    %117 = vmatprep.subr.mxu0 0.0
    %118 = vmatpush1.msra.mxu0 0.0
    %119 = vmatprep.subr.mxu0 0.0
    %120 = vmatpush1.msra.mxu0 0.0
    %121 = vmatprep.subr.mxu0 0.0
    %122 = vmatpush1.msra.mxu0 0.0
    %123 = vmatprep.subr.mxu0 0.0
    %124 = vmatpush1.msra.mxu0 0.0
    %125 = vmatprep.subr.mxu0 0.0
    %126 = vmatpush1.msra.mxu0 0.0
    %127 = vmatprep.mubr.f32.mxu0 0.0
    %128 = vmatmul.mubr.f32.gmra.mrb[0].mxu0 %v58
    %v129 = vpop.f32.mrb[0].mxu0
    %v130 = vadd.f32 0.0, %v129
    %v131 = vpop.f32.mrb[0].mxu0
    %132 = vmatprep.mubr.f32.mxu0 0.0
    %133 = vmatmul.mubr.f32.gmra.mrb[0].mxu0 %v61
    %v134 = vpop.f32.mrb[0].mxu0
    %v135 = vadd.f32 0.0, %v134
    %v136 = vpop.f32.mrb[0].mxu0
    %137 = vdwg.mxu0
    %v138 = vld [vmem:[%s2] sm:$0xff]
    %v139 = vld [vmem:[%s2 + $0x8] sm:$0xff]
    %v140 = vld [vmem:[%s3] sm:$0x1]
    %v142 = vlaneseq
    %v143 = vshrl.u32 %v142, 7
    %v144 = vsub.s32 0, %v143
    %v145 = vrot.slane %v140, %v144
    %vm147 = vcmask 130048
    %v149 = vsel %vm147, %v130, 0
    %v152 = vsel %vm147, %v135, 0
    %154 = vmatprep.subr.mxu0 0.0
    %155 = vmatpush1.msra.mxu0 %v138
    %156 = vmatprep.subr.mxu0 0.0
    %157 = vmatpush1.msra.mxu0 %v139
    %158 = vmatprep.subr.mxu0 0.0
    %159 = vmatpush1.msra.mxu0 0.0
    %160 = vmatprep.subr.mxu0 0.0
    %161 = vmatpush1.msra.mxu0 0.0
    %162 = vmatprep.subr.mxu0 0.0
    %163 = vmatpush1.msra.mxu0 0.0
    %164 = vmatprep.subr.mxu0 0.0
    %165 = vmatpush1.msra.mxu0 0.0
    %166 = vmatprep.subr.mxu0 0.0
    %167 = vmatpush1.msra.mxu0 0.0
    %168 = vmatprep.subr.mxu0 0.0
    %169 = vmatpush1.msra.mxu0 0.0
    %170 = vmatprep.subr.mxu0 0.0
    %171 = vmatpush1.msra.mxu0 0.0
    %172 = vmatprep.subr.mxu0 0.0
    %173 = vmatpush1.msra.mxu0 0.0
    %174 = vmatprep.subr.mxu0 0.0
    %175 = vmatpush1.msra.mxu0 0.0
    %176 = vmatprep.subr.mxu0 0.0
    %177 = vmatpush1.msra.mxu0 0.0
    %178 = vmatprep.subr.mxu0 0.0
    %179 = vmatpush1.msra.mxu0 0.0
    %180 = vmatprep.subr.mxu0 0.0
    %181 = vmatpush1.msra.mxu0 0.0
    %182 = vmatprep.subr.mxu0 0.0
    %183 = vmatpush1.msra.mxu0 0.0
    %184 = vmatprep.subr.mxu0 0.0
    %185 = vmatpush1.msra.mxu0 0.0
    %186 = vmatprep.subr.mxu0 0.0
    %187 = vmatpush1.msra.mxu0 0.0
    %188 = vmatprep.subr.mxu0 0.0
    %189 = vmatpush1.msra.mxu0 0.0
    %190 = vmatprep.subr.mxu0 0.0
    %191 = vmatpush1.msra.mxu0 0.0
    %192 = vmatprep.subr.mxu0 0.0
    %193 = vmatpush1.msra.mxu0 0.0
    %194 = vmatprep.subr.mxu0 0.0
    %195 = vmatpush1.msra.mxu0 0.0
    %196 = vmatprep.subr.mxu0 0.0
    %197 = vmatpush1.msra.mxu0 0.0
    %198 = vmatprep.subr.mxu0 0.0
    %199 = vmatpush1.msra.mxu0 0.0
    %200 = vmatprep.subr.mxu0 0.0
    %201 = vmatpush1.msra.mxu0 0.0
    %202 = vmatprep.subr.mxu0 0.0
    %203 = vmatpush1.msra.mxu0 0.0
    %204 = vmatprep.subr.mxu0 0.0
    %205 = vmatpush1.msra.mxu0 0.0
    %206 = vmatprep.subr.mxu0 0.0
    %207 = vmatpush1.msra.mxu0 0.0
    %208 = vmatprep.subr.mxu0 0.0
    %209 = vmatpush1.msra.mxu0 0.0
    %210 = vmatprep.subr.mxu0 0.0
    %211 = vmatpush1.msra.mxu0 0.0
    %212 = vmatprep.subr.mxu0 0.0
    %213 = vmatpush1.msra.mxu0 0.0
    %214 = vmatprep.subr.mxu0 0.0
    %215 = vmatpush1.msra.mxu0 0.0
    %216 = vmatprep.subr.mxu0 0.0
    %217 = vmatpush1.msra.mxu0 0.0
    %218 = vmatprep.mubr.f32.mxu0 0.0
    %219 = vmatmul.mubr.f32.gmra.mrb[0].mxu0 %v149
    %v220 = vpop.f32.mrb[0].mxu0
    %v221 = vadd.f32 %v145, %v220
    %v222 = vpop.f32.mrb[0].mxu0
    %223 = vmatprep.mubr.f32.mxu0 0.0
    %224 = vmatmul.mubr.f32.gmra.mrb[0].mxu0 %v152
    %v225 = vpop.f32.mrb[0].mxu0
    %v226 = vadd.f32 %v145, %v225
    %v227 = vpop.f32.mrb[0].mxu0
    %228 = vdwg.mxu0
    %v229 = vmax.f32 %v221, 0.0
    %v230 = vmax.f32 %v226, 0.0
    %v231 = vld [vmem:[%s4] sm:$0xff]
    %v232 = vsel %vm147, %v231, 0.0
    %v233 = vrot.slane %v232, 4
    %v234 = vadd.f32 %v232, %v233
    %v235 = vrot.slane %v234, 2
    %v236 = vadd.f32 %v234, %v235
    %v237 = vrot.slane %v236, 1
    %v238 = vadd.f32 %v236, %v237
    %v239 = vmax.f32 %v238, 1.0
    %v240 = vrsqrt.pop %v239
    %241 = vadd.xlane.f32.xlu0 %v232
    %v242 = vpop.xlane.xlu0 %241
    %v243 = vmax.f32 %v242, 1.0
    %v244 = vrsqrt.pop %v243
    %v245 = vmul.f32 %v231, %v240
    %v246 = vmul.f32 %v245, %v244
    %v248 = vsel %vm147, %v246, 0
    %250 = vmatprep.subr.mxu0 0.0
    %251 = vmatpush1.msra.mxu0 %v229
    %252 = vmatprep.subr.mxu0 0.0
    %253 = vmatpush1.msra.mxu0 %v230
    %254 = vmatprep.subr.mxu0 0.0
    %255 = vmatpush1.msra.mxu0 0.0
    %256 = vmatprep.subr.mxu0 0.0
    %257 = vmatpush1.msra.mxu0 0.0
    %258 = vmatprep.subr.mxu0 0.0
    %259 = vmatpush1.msra.mxu0 0.0
    %260 = vmatprep.subr.mxu0 0.0
    %261 = vmatpush1.msra.mxu0 0.0
    %262 = vmatprep.subr.mxu0 0.0
    %263 = vmatpush1.msra.mxu0 0.0
    %264 = vmatprep.subr.mxu0 0.0
    %265 = vmatpush1.msra.mxu0 0.0
    %266 = vmatprep.subr.mxu0 0.0
    %267 = vmatpush1.msra.mxu0 0.0
    %268 = vmatprep.subr.mxu0 0.0
    %269 = vmatpush1.msra.mxu0 0.0
    %270 = vmatprep.subr.mxu0 0.0
    %271 = vmatpush1.msra.mxu0 0.0
    %272 = vmatprep.subr.mxu0 0.0
    %273 = vmatpush1.msra.mxu0 0.0
    %274 = vmatprep.subr.mxu0 0.0
    %275 = vmatpush1.msra.mxu0 0.0
    %276 = vmatprep.subr.mxu0 0.0
    %277 = vmatpush1.msra.mxu0 0.0
    %278 = vmatprep.subr.mxu0 0.0
    %279 = vmatpush1.msra.mxu0 0.0
    %280 = vmatprep.subr.mxu0 0.0
    %281 = vmatpush1.msra.mxu0 0.0
    %282 = vmatprep.subr.mxu0 0.0
    %283 = vmatpush1.msra.mxu0 0.0
    %284 = vmatprep.subr.mxu0 0.0
    %285 = vmatpush1.msra.mxu0 0.0
    %286 = vmatprep.subr.mxu0 0.0
    %287 = vmatpush1.msra.mxu0 0.0
    %288 = vmatprep.subr.mxu0 0.0
    %289 = vmatpush1.msra.mxu0 0.0
    %290 = vmatprep.subr.mxu0 0.0
    %291 = vmatpush1.msra.mxu0 0.0
    %292 = vmatprep.subr.mxu0 0.0
    %293 = vmatpush1.msra.mxu0 0.0
    %294 = vmatprep.subr.mxu0 0.0
    %295 = vmatpush1.msra.mxu0 0.0
    %296 = vmatprep.subr.mxu0 0.0
    %297 = vmatpush1.msra.mxu0 0.0
    %298 = vmatprep.subr.mxu0 0.0
    %299 = vmatpush1.msra.mxu0 0.0
    %300 = vmatprep.subr.mxu0 0.0
    %301 = vmatpush1.msra.mxu0 0.0
    %302 = vmatprep.subr.mxu0 0.0
    %303 = vmatpush1.msra.mxu0 0.0
    %304 = vmatprep.subr.mxu0 0.0
    %305 = vmatpush1.msra.mxu0 0.0
    %306 = vmatprep.subr.mxu0 0.0
    %307 = vmatpush1.msra.mxu0 0.0
    %308 = vmatprep.subr.mxu0 0.0
    %309 = vmatpush1.msra.mxu0 0.0
    %310 = vmatprep.subr.mxu0 0.0
    %311 = vmatpush1.msra.mxu0 0.0
    %312 = vmatprep.subr.mxu0 0.0
    %313 = vmatpush1.msra.mxu0 0.0
    %314 = vmatprep.mubr.f32.mxu0 0.0
    %315 = vmatmul.mubr.f32.gmra.mrb[0].mxu0 %v248
    %v316 = vpop.f32.mrb[0].mxu0
    %v317 = vadd.f32 0.0, %v316
    %v318 = vpop.f32.mrb[0].mxu0
    %319 = vdwg.mxu0
    %v320 = vld [vmem:[%s5] sm:$0xff]
    %v321 = vld [vmem:[%s5 + $0x8] sm:$0xff]
    %v322 = vld [vmem:[%s5 + $0x10] sm:$0xff]
    %v323 = vld [vmem:[%s5 + $0x18] sm:$0xff]
    %v324 = vld [vmem:[%s6] sm:$0x1]
    %v326 = vlaneseq
    %v327 = vshrl.u32 %v326, 7
    %v328 = vsub.s32 0, %v327
    %v329 = vrot.slane %v324, %v328
    %v332 = vsel %vm33, %v317, 0
    %334 = vmatprep.subr.mxu0 0.0
    %335 = vmatpush1.msra.mxu0 %v320
    %336 = vmatprep.subr.mxu0 0.0
    %337 = vmatpush1.msra.mxu0 %v321
    %338 = vmatprep.subr.mxu0 0.0
    %339 = vmatpush1.msra.mxu0 %v322
    %340 = vmatprep.subr.mxu0 0.0
    %341 = vmatpush1.msra.mxu0 %v323
    %342 = vmatprep.subr.mxu0 0.0
    %343 = vmatpush1.msra.mxu0 0.0
    %344 = vmatprep.subr.mxu0 0.0
    %345 = vmatpush1.msra.mxu0 0.0
    %346 = vmatprep.subr.mxu0 0.0
    %347 = vmatpush1.msra.mxu0 0.0
    %348 = vmatprep.subr.mxu0 0.0
    %349 = vmatpush1.msra.mxu0 0.0
    %350 = vmatprep.subr.mxu0 0.0
    %351 = vmatpush1.msra.mxu0 0.0
    %352 = vmatprep.subr.mxu0 0.0
    %353 = vmatpush1.msra.mxu0 0.0
    %354 = vmatprep.subr.mxu0 0.0
    %355 = vmatpush1.msra.mxu0 0.0
    %356 = vmatprep.subr.mxu0 0.0
    %357 = vmatpush1.msra.mxu0 0.0
    %358 = vmatprep.subr.mxu0 0.0
    %359 = vmatpush1.msra.mxu0 0.0
    %360 = vmatprep.subr.mxu0 0.0
    %361 = vmatpush1.msra.mxu0 0.0
    %362 = vmatprep.subr.mxu0 0.0
    %363 = vmatpush1.msra.mxu0 0.0
    %364 = vmatprep.subr.mxu0 0.0
    %365 = vmatpush1.msra.mxu0 0.0
    %366 = vmatprep.subr.mxu0 0.0
    %367 = vmatpush1.msra.mxu0 0.0
    %368 = vmatprep.subr.mxu0 0.0
    %369 = vmatpush1.msra.mxu0 0.0
    %370 = vmatprep.subr.mxu0 0.0
    %371 = vmatpush1.msra.mxu0 0.0
    %372 = vmatprep.subr.mxu0 0.0
    %373 = vmatpush1.msra.mxu0 0.0
    %374 = vmatprep.subr.mxu0 0.0
    %375 = vmatpush1.msra.mxu0 0.0
    %376 = vmatprep.subr.mxu0 0.0
    %377 = vmatpush1.msra.mxu0 0.0
    %378 = vmatprep.subr.mxu0 0.0
    %379 = vmatpush1.msra.mxu0 0.0
    %380 = vmatprep.subr.mxu0 0.0
    %381 = vmatpush1.msra.mxu0 0.0
    %382 = vmatprep.subr.mxu0 0.0
    %383 = vmatpush1.msra.mxu0 0.0
    %384 = vmatprep.subr.mxu0 0.0
    %385 = vmatpush1.msra.mxu0 0.0
    %386 = vmatprep.subr.mxu0 0.0
    %387 = vmatpush1.msra.mxu0 0.0
    %388 = vmatprep.subr.mxu0 0.0
    %389 = vmatpush1.msra.mxu0 0.0
    %390 = vmatprep.subr.mxu0 0.0
    %391 = vmatpush1.msra.mxu0 0.0
    %392 = vmatprep.subr.mxu0 0.0
    %393 = vmatpush1.msra.mxu0 0.0
    %394 = vmatprep.subr.mxu0 0.0
    %395 = vmatpush1.msra.mxu0 0.0
    %396 = vmatprep.subr.mxu0 0.0
    %397 = vmatpush1.msra.mxu0 0.0
    %398 = vmatprep.mubr.f32.mxu0 0.0
    %399 = vmatmul.mubr.f32.gmra.mrb[0].mxu0 %v332
    %v400 = vpop.f32.mrb[0].mxu0
    %v401 = vadd.f32 %v329, %v400
    %v402 = vpop.f32.mrb[0].mxu0
    %403 = vdwg.mxu0
    %v404 = vmax.f32 %v401, 0.0
    %v405 = vmul.f32 %v404, %v404
    %v406 = vsel %vm33, %v405, 0.0
    %407 = vadd.xlane.f32.xlu0 %v406
    %v408 = vpop.xlane.xlu0 %407
    %v409 = vrot.slane %v408, 4
    %v410 = vadd.f32 %v408, %v409
    %v411 = vrot.slane %v410, 2
    %v412 = vadd.f32 %v410, %v411
    %v413 = vrot.slane %v412, 1
    %v414 = vadd.f32 %v412, %v413
    %s415 = vtos %v414
    %v416 = vstv %s415
    %v417 = vrsqrt.pop %v416
    %s418 = vtos %v417
    %v419 = vstv %s418
    %v420 = vmul.f32 %v404, %v419
    %421 = vst.msk [vmem:[#allocation2] sm:$0xff] %vm33, %v420
    // Predicated region
    $region30: #{gcn_forward.1} parent=1 // pred_check
      _
    $region31: #{gcn_forward.1} parent=1 // pred_check_branch
      %423 = sbr.rel (0) target = $region33
    $region32: #{gcn_forward.1} parent=1 // pred_region
      %s425 = ssub.s32 128, 128
      %426 = vsyncadd [#allocation3], %s425
      %s428 = sshll.u32 [#allocation2], 4
      %s429 = int_to_ptr.vmem [resolvable:$true] %s428
      %431 = dma.vmem_to_hbm [thread:$0]  %s429, 128, %s7, [#allocation3]
    $region33: #{gcn_forward.1} parent=1 // pred_fallthru
      _
    // Predicated region
    $region34: #{gcn_forward.1} parent=1 // pred_check
      _
    $region35: #{gcn_forward.1} parent=1 // pred_check_branch
      %433 = sbr.rel (0) target = $region37
    $region36: #{gcn_forward.1} parent=1 // pred_region
      %434 = dma.done [#allocation3], 128
    $region37: #{gcn_forward.1} parent=1 // pred_fallthru
      _
    %435 = vsyncpa [#allocation3], 1

</llo_original>
